<compile_context>
chip_gen: v5e
topology: v5e:2x2
jax: 0.10.0
libtpu: 0.0.40
codegen_flags: <defaults>
</compile_context>

<pallas_src>
import functools

import jax
import jax.numpy as jnp
from jax.experimental import pallas as pl
from jax.experimental.pallas import tpu as pltpu


def _silu_f32(v):
    # Elementwise math stays in f32 (v5e has no bf16 VPU/EUP path).
    return v * jax.nn.sigmoid(v)


def _residual_block_kernel(x_ref, w1_ref, b1_ref, w2_ref, b2_ref, o_ref,
                           *, compute_dtype):
    x = x_ref[...]
    # Residual path in f32; only cast if the input is not already f32.
    x_f32 = x if x.dtype == jnp.float32 else x.astype(jnp.float32)

    # MXU operands in compute_dtype (bf16 on v6e/v7x for peak MXU throughput);
    # accumulation stays f32 via preferred_element_type.
    x_mm = x if x.dtype == compute_dtype else x.astype(compute_dtype)
    w1 = w1_ref[...]
    w1 = w1 if w1.dtype == compute_dtype else w1.astype(compute_dtype)
    w2 = w2_ref[...]
    w2 = w2 if w2.dtype == compute_dtype else w2.astype(compute_dtype)

    h = jnp.dot(x_mm, w1, preferred_element_type=jnp.float32)
    h = _silu_f32(h + b1_ref[...])                    # (TM, H) + (1, H) broadcast
    h = h if h.dtype == compute_dtype else h.astype(compute_dtype)

    z = jnp.dot(h, w2, preferred_element_type=jnp.float32)
    z = z + b2_ref[...]

    o_ref[...] = _silu_f32(x_f32 + z).astype(o_ref.dtype)


def _round_up(n, m):
    return (n + m - 1) // m * m


def _const_spec(shape, single_buffer):
    # Weights / biases are grid-invariant: single-buffer them so they don't pay
    # 2x VMEM under the default double-buffered pipeline.
    index_map = lambda i: (0,) * len(shape)
    if single_buffer:
        return pl.BlockSpec(shape, index_map, pipeline_mode=pl.Buffered(1))
    return pl.BlockSpec(shape, index_map)


@functools.partial(
    jax.jit, static_argnames=("block_m", "compute_dtype", "single_buffer_weights"))
def _residual_block_call(x, w1, b1, w2, b2, *, block_m, compute_dtype,
                         single_buffer_weights):
    B, H = x.shape
    grid = (B // block_m,)

    x_isz = jnp.dtype(x.dtype).itemsize
    w_isz = jnp.dtype(w1.dtype).itemsize
    w_bufs = 1 if single_buffer_weights else 2

    # VMEM budget: weights (+biases) resident, x/out tiles double-buffered,
    # plus in-kernel f32 temporaries; ~4 MiB headroom.  Clamp to [32, 64] MiB so
    # we never request more than v7x physical VMEM but still lift v5e's 16 MiB
    # default when a big tile plan needs it.
    needed = (w_bufs * 2 * H * H * w_isz
              + w_bufs * 2 * H * 4
              + 4 * block_m * H * x_isz
              + 4 * block_m * H * 4
              + (4 << 20))
    vmem_bytes = int(min(max(needed, 32 << 20), 64 << 20))

    cost = pl.CostEstimate(
        flops=4 * B * H * H,                 # two (B,H)x(H,H) matmuls
        transcendentals=2 * B * H,           # two SiLUs over (B,H)
        bytes_accessed=2 * H * H * w_isz + 2 * H * 4 + 2 * B * H * x_isz,
    )

    kernel = functools.partial(_residual_block_kernel, compute_dtype=compute_dtype)

    return pl.pallas_call(
        kernel,
        out_shape=jax.ShapeDtypeStruct((B, H), x.dtype),
        grid_spec=pltpu.PrefetchScalarGridSpec(
            num_scalar_prefetch=0,
            grid=grid,
            in_specs=[
                pl.BlockSpec((block_m, H), lambda i: (i, 0)),      # x tile
                _const_spec((H, H), single_buffer_weights),        # W1 (resident)
                _const_spec((1, H), single_buffer_weights),        # b1
                _const_spec((H, H), single_buffer_weights),        # W2 (resident)
                _const_spec((1, H), single_buffer_weights),        # b2
            ],
            out_specs=pl.BlockSpec((block_m, H), lambda i: (i, 0)),
        ),
        compiler_params=pltpu.CompilerParams(
            dimension_semantics=("parallel",),
            vmem_limit_bytes=vmem_bytes,
        ),
        cost_estimate=cost,
    )(x, w1, b1, w2, b2)


def residual_block(x, w1, b1, w2, b2, *, block_m=256, compute_dtype=None):
    """x: (B, H). w1/w2: (H, H) pre-transposed to (in, out). b1/b2: (1, H).

    compute_dtype: dtype used for the two MXU matmuls (e.g. jnp.bfloat16 on
    v6e/v7x); accumulation and SiLU/residual math are always f32.
    """
    B, H = x.shape
    cd = jnp.dtype(compute_dtype if compute_dtype is not None else x.dtype)

    # Clamp the M tile to the (sublane-aligned) batch, pad B up to a multiple.
    bm = min(block_m, _round_up(B, 8))
    Bp = _round_up(B, bm)
    xp = x if Bp == B else jnp.pad(x, ((0, Bp - B), (0, 0)))

    try:
        out = _residual_block_call(xp, w1, b1, w2, b2, block_m=bm,
                                   compute_dtype=cd, single_buffer_weights=True)
    except Exception:
        # Fallback for jax versions where pl.Buffered(1) single-buffering is
        # rejected: use default (double-buffered) specs for the constants.
        out = _residual_block_call(xp, w1, b1, w2, b2, block_m=bm,
                                   compute_dtype=cd, single_buffer_weights=False)
    return out if Bp == B else out[:B]


def reference(x, w1, b1, w2, b2):
    h = x @ w1 + b1
    h = h * jax.nn.sigmoid(h)
    z = h @ w2 + b2
    y = x + z
    return y * jax.nn.sigmoid(y)


def _make_inputs(B, H, key):
    kx, k1, k2, k3, k4 = jax.random.split(key, 5)
    scale = 1.0 / jnp.sqrt(jnp.float32(H))
    x = jax.random.normal(kx, (B, H), dtype=jnp.float32)
    # Deterministic synthetic nn.Linear(hidden, hidden) x2 params, stored
    # pre-transposed as (in, out); biases kept 2D (1, H) for TPU layout.
    w1 = jax.random.uniform(k1, (H, H), jnp.float32, -scale, scale)
    b1 = jax.random.uniform(k2, (1, H), jnp.float32, -scale, scale)
    w2 = jax.random.uniform(k3, (H, H), jnp.float32, -scale, scale)
    b2 = jax.random.uniform(k4, (1, H), jnp.float32, -scale, scale)
    return x, w1, b1, w2, b2


if __name__ == "__main__":
    # Small shape (module with hidden_dim=128, batch=8).
    x, w1, b1, w2, b2 = _make_inputs(8, 128, jax.random.PRNGKey(0))
    out = jax.block_until_ready(residual_block(x, w1, b1, w2, b2))
    ref = reference(x, w1, b1, w2, b2)
    assert out.shape == x.shape
    assert jnp.allclose(out, ref, atol=1e-5, rtol=1e-5), "mismatch vs reference (small)"

    # Larger shape: multi-step grid (block_m=256, 2 parallel steps -> megacore).
    x, w1, b1, w2, b2 = _make_inputs(512, 256, jax.random.PRNGKey(1))
    out = jax.block_until_ready(residual_block(x, w1, b1, w2, b2))
    ref = reference(x, w1, b1, w2, b2)
    assert jnp.allclose(out, ref, atol=1e-4, rtol=1e-4), "mismatch vs reference (large)"

    # Optional bf16-MXU path (f32 accumulate, f32 SiLU) — looser tolerance.
    out_bf16 = jax.block_until_ready(
        residual_block(x, w1, b1, w2, b2, compute_dtype=jnp.bfloat16))
    assert jnp.allclose(out_bf16, ref, atol=5e-2, rtol=5e-2), "bf16 path mismatch"

    print("KERNEL_OK")
</pallas_src>

<mosaic_0001>
module attributes {stable_mosaic.version = 11 : i64} {
  func.func @_residual_block_kernel(%arg0: i32, %arg1: memref<8x128xf32, #tpu.memory_space<vmem>>, %arg2: memref<128x128xf32, #tpu.memory_space<vmem>>, %arg3: memref<1x128xf32, #tpu.memory_space<vmem>>, %arg4: memref<128x128xf32, #tpu.memory_space<vmem>>, %arg5: memref<1x128xf32, #tpu.memory_space<vmem>>, %arg6: memref<8x128xf32, #tpu.memory_space<vmem>>) attributes {dimension_semantics = [#tpu.dimension_semantics<parallel>], iteration_bounds = array<i64: 1>, scalar_prefetch = 0 : i64, scratch_operands = 0 : i64, tpu.core_type = #tpu.core_type<tc>, window_params = [{transform_indices = @transform_0, window_bounds = array<i64: 8, 128>}, {pipeline_mode = #tpu.pipeline_mode<synchronous>, transform_indices = @transform_1, window_bounds = array<i64: 128, 128>}, {pipeline_mode = #tpu.pipeline_mode<synchronous>, transform_indices = @transform_2, window_bounds = array<i64: 1, 128>}, {pipeline_mode = #tpu.pipeline_mode<synchronous>, transform_indices = @transform_3, window_bounds = array<i64: 128, 128>}, {pipeline_mode = #tpu.pipeline_mode<synchronous>, transform_indices = @transform_4, window_bounds = array<i64: 1, 128>}, {transform_indices = @transform_5, window_bounds = array<i64: 8, 128>}]} {
    %c0 = arith.constant 0 : index
    %c0_0 = arith.constant 0 : index
    %0 = vector.load %arg1[%c0, %c0_0] : memref<8x128xf32, #tpu.memory_space<vmem>>, vector<8x128xf32>
    %c0_1 = arith.constant 0 : index
    %c0_2 = arith.constant 0 : index
    %1 = vector.load %arg2[%c0_1, %c0_2] : memref<128x128xf32, #tpu.memory_space<vmem>>, vector<128x128xf32>
    %c0_3 = arith.constant 0 : index
    %c0_4 = arith.constant 0 : index
    %2 = vector.load %arg4[%c0_3, %c0_4] : memref<128x128xf32, #tpu.memory_space<vmem>>, vector<128x128xf32>
    %cst = arith.constant dense<0.000000e+00> : vector<8x128xf32>
    %3 = tpu.matmul %0, %1, %cst {dimension_numbers = #tpu.dot_dimension_numbers<[1], [0], [0], [1], [0, 0, 1, 1], [], []>} : vector<8x128xf32>, vector<128x128xf32>, vector<8x128xf32> -> vector<8x128xf32>
    %c0_5 = arith.constant 0 : index
    %c0_6 = arith.constant 0 : index
    %4 = vector.load %arg3[%c0_5, %c0_6] : memref<1x128xf32, #tpu.memory_space<vmem>>, vector<1x128xf32>
    %5 = vector.broadcast %4 : vector<1x128xf32> to vector<8x128xf32>
    %6 = arith.addf %3, %5 : vector<8x128xf32>
    %7 = arith.negf %6 : vector<8x128xf32>
    %8 = math.exp %7 : vector<8x128xf32>
    %cst_7 = arith.constant 1.000000e+00 : f32
    %9 = vector.broadcast %cst_7 : f32 to vector<8x128xf32>
    %10 = arith.addf %9, %8 : vector<8x128xf32>
    %11 = arith.divf %9, %10 : vector<8x128xf32>
    %12 = arith.mulf %6, %11 : vector<8x128xf32>
    %cst_8 = arith.constant dense<0.000000e+00> : vector<8x128xf32>
    %13 = tpu.matmul %12, %2, %cst_8 {dimension_numbers = #tpu.dot_dimension_numbers<[1], [0], [0], [1], [0, 0, 1, 1], [], []>} : vector<8x128xf32>, vector<128x128xf32>, vector<8x128xf32> -> vector<8x128xf32>
    %c0_9 = arith.constant 0 : index
    %c0_10 = arith.constant 0 : index
    %14 = vector.load %arg5[%c0_9, %c0_10] : memref<1x128xf32, #tpu.memory_space<vmem>>, vector<1x128xf32>
    %15 = vector.broadcast %14 : vector<1x128xf32> to vector<8x128xf32>
    %16 = arith.addf %13, %15 : vector<8x128xf32>
    %17 = arith.addf %0, %16 : vector<8x128xf32>
    %18 = arith.negf %17 : vector<8x128xf32>
    %19 = math.exp %18 : vector<8x128xf32>
    %cst_11 = arith.constant 1.000000e+00 : f32
    %20 = vector.broadcast %cst_11 : f32 to vector<8x128xf32>
    %21 = arith.addf %20, %19 : vector<8x128xf32>
    %22 = arith.divf %20, %21 : vector<8x128xf32>
    %23 = arith.mulf %17, %22 : vector<8x128xf32>
    %c0_12 = arith.constant 0 : index
    %c0_13 = arith.constant 0 : index
    %24 = vector.load %arg6[%c0_12, %c0_13] : memref<8x128xf32, #tpu.memory_space<vmem>>, vector<8x128xf32>
    tpu.vector_store %arg6[%c0_12, %c0_13], %23 {strides = array<i32>} : memref<8x128xf32, #tpu.memory_space<vmem>>, vector<8x128xf32>,
    return
  }
  func.func @transform_0(%arg0: i32) -> (i32, i32) {
    %c0_i32 = arith.constant 0 : i32
    %c0_i32_0 = arith.constant 0 : i32
    return %arg0, %c0_i32 : i32, i32
  }
  func.func @transform_1(%arg0: i32) -> (i32, i32) {
    %c0_i32 = arith.constant 0 : i32
    %c0_i32_0 = arith.constant 0 : i32
    %c0_i32_1 = arith.constant 0 : i32
    return %c0_i32, %c0_i32_0 : i32, i32
  }
  func.func @transform_2(%arg0: i32) -> (i32, i32) {
    %c0_i32 = arith.constant 0 : i32
    %c0_i32_0 = arith.constant 0 : i32
    %c0_i32_1 = arith.constant 0 : i32
    return %c0_i32, %c0_i32_0 : i32, i32
  }
  func.func @transform_3(%arg0: i32) -> (i32, i32) {
    %c0_i32 = arith.constant 0 : i32
    %c0_i32_0 = arith.constant 0 : i32
    %c0_i32_1 = arith.constant 0 : i32
    return %c0_i32, %c0_i32_0 : i32, i32
  }
  func.func @transform_4(%arg0: i32) -> (i32, i32) {
    %c0_i32 = arith.constant 0 : i32
    %c0_i32_0 = arith.constant 0 : i32
    %c0_i32_1 = arith.constant 0 : i32
    return %c0_i32, %c0_i32_0 : i32, i32
  }
  func.func @transform_5(%arg0: i32) -> (i32, i32) {
    %c0_i32 = arith.constant 0 : i32
    %c0_i32_0 = arith.constant 0 : i32
    return %arg0, %c0_i32 : i32, i32
  }
}

module attributes {stable_mosaic.version = 11 : i64} {
  func.func @_residual_block_kernel(%arg0: i32, %arg1: memref<8x128xf32, #tpu.memory_space<vmem>>, %arg2: memref<128x128xf32, #tpu.memory_space<vmem>>, %arg3: memref<1x128xf32, #tpu.memory_space<vmem>>, %arg4: memref<128x128xf32, #tpu.memory_space<vmem>>, %arg5: memref<1x128xf32, #tpu.memory_space<vmem>>, %arg6: memref<8x128xf32, #tpu.memory_space<vmem>>) attributes {dimension_semantics = [#tpu.dimension_semantics<parallel>], iteration_bounds = array<i64: 1>, scalar_prefetch = 0 : i64, scratch_operands = 0 : i64, tpu.core_type = #tpu.core_type<tc>, window_params = [{transform_indices = @transform_0, window_bounds = array<i64: 8, 128>}, {pipeline_mode = #tpu.pipeline_mode<synchronous>, transform_indices = @transform_1, window_bounds = array<i64: 128, 128>}, {pipeline_mode = #tpu.pipeline_mode<synchronous>, transform_indices = @transform_2, window_bounds = array<i64: 1, 128>}, {pipeline_mode = #tpu.pipeline_mode<synchronous>, transform_indices = @transform_3, window_bounds = array<i64: 128, 128>}, {pipeline_mode = #tpu.pipeline_mode<synchronous>, transform_indices = @transform_4, window_bounds = array<i64: 1, 128>}, {transform_indices = @transform_5, window_bounds = array<i64: 8, 128>}]} {
    %c0 = arith.constant 0 : index
    %c0_0 = arith.constant 0 : index
    %0 = vector.load %arg1[%c0, %c0_0] : memref<8x128xf32, #tpu.memory_space<vmem>>, vector<8x128xf32>
    %c0_1 = arith.constant 0 : index
    %c0_2 = arith.constant 0 : index
    %1 = vector.load %arg2[%c0_1, %c0_2] : memref<128x128xf32, #tpu.memory_space<vmem>>, vector<128x128xf32>
    %c0_3 = arith.constant 0 : index
    %c0_4 = arith.constant 0 : index
    %2 = vector.load %arg4[%c0_3, %c0_4] : memref<128x128xf32, #tpu.memory_space<vmem>>, vector<128x128xf32>
    %cst = arith.constant dense<0.000000e+00> : vector<8x128xf32>
    %3 = tpu.matmul %0, %1, %cst {dimension_numbers = #tpu.dot_dimension_numbers<[1], [0], [0], [1], [0, 0, 1, 1], [], []>} : vector<8x128xf32>, vector<128x128xf32>, vector<8x128xf32> -> vector<8x128xf32>
    %c0_5 = arith.constant 0 : index
    %c0_6 = arith.constant 0 : index
    %4 = vector.load %arg3[%c0_5, %c0_6] : memref<1x128xf32, #tpu.memory_space<vmem>>, vector<1x128xf32>
    %5 = vector.broadcast %4 : vector<1x128xf32> to vector<8x128xf32>
    %6 = arith.addf %3, %5 : vector<8x128xf32>
    %7 = arith.negf %6 : vector<8x128xf32>
    %8 = math.exp %7 : vector<8x128xf32>
    %cst_7 = arith.constant 1.000000e+00 : f32
    %9 = vector.broadcast %cst_7 : f32 to vector<8x128xf32>
    %10 = arith.addf %9, %8 : vector<8x128xf32>
    %11 = arith.divf %9, %10 : vector<8x128xf32>
    %12 = arith.mulf %6, %11 : vector<8x128xf32>
    %cst_8 = arith.constant dense<0.000000e+00> : vector<8x128xf32>
    %13 = tpu.matmul %12, %2, %cst_8 {dimension_numbers = #tpu.dot_dimension_numbers<[1], [0], [0], [1], [0, 0, 1, 1], [], []>} : vector<8x128xf32>, vector<128x128xf32>, vector<8x128xf32> -> vector<8x128xf32>
    %c0_9 = arith.constant 0 : index
    %c0_10 = arith.constant 0 : index
    %14 = vector.load %arg5[%c0_9, %c0_10] : memref<1x128xf32, #tpu.memory_space<vmem>>, vector<1x128xf32>
    %15 = vector.broadcast %14 : vector<1x128xf32> to vector<8x128xf32>
    %16 = arith.addf %13, %15 : vector<8x128xf32>
    %17 = arith.addf %0, %16 : vector<8x128xf32>
    %18 = arith.negf %17 : vector<8x128xf32>
    %19 = math.exp %18 : vector<8x128xf32>
    %cst_11 = arith.constant 1.000000e+00 : f32
    %20 = vector.broadcast %cst_11 : f32 to vector<8x128xf32>
    %21 = arith.addf %20, %19 : vector<8x128xf32>
    %22 = arith.divf %20, %21 : vector<8x128xf32>
    %23 = arith.mulf %17, %22 : vector<8x128xf32>
    %c0_12 = arith.constant 0 : index
    %c0_13 = arith.constant 0 : index
    %24 = vector.load %arg6[%c0_12, %c0_13] : memref<8x128xf32, #tpu.memory_space<vmem>>, vector<8x128xf32>
    tpu.vector_store %arg6[%c0_12, %c0_13], %23 {strides = array<i32>} : memref<8x128xf32, #tpu.memory_space<vmem>>, vector<8x128xf32>,
    return
  }
  func.func @transform_0(%arg0: i32) -> (i32, i32) {
    %c0_i32 = arith.constant 0 : i32
    %c0_i32_0 = arith.constant 0 : i32
    return %arg0, %c0_i32 : i32, i32
  }
  func.func @transform_1(%arg0: i32) -> (i32, i32) {
    %c0_i32 = arith.constant 0 : i32
    %c0_i32_0 = arith.constant 0 : i32
    %c0_i32_1 = arith.constant 0 : i32
    return %c0_i32, %c0_i32_0 : i32, i32
  }
  func.func @transform_2(%arg0: i32) -> (i32, i32) {
    %c0_i32 = arith.constant 0 : i32
    %c0_i32_0 = arith.constant 0 : i32
    %c0_i32_1 = arith.constant 0 : i32
    return %c0_i32, %c0_i32_0 : i32, i32
  }
  func.func @transform_3(%arg0: i32) -> (i32, i32) {
    %c0_i32 = arith.constant 0 : i32
    %c0_i32_0 = arith.constant 0 : i32
    %c0_i32_1 = arith.constant 0 : i32
    return %c0_i32, %c0_i32_0 : i32, i32
  }
  func.func @transform_4(%arg0: i32) -> (i32, i32) {
    %c0_i32 = arith.constant 0 : i32
    %c0_i32_0 = arith.constant 0 : i32
    %c0_i32_1 = arith.constant 0 : i32
    return %c0_i32, %c0_i32_0 : i32, i32
  }
  func.func @transform_5(%arg0: i32) -> (i32, i32) {
    %c0_i32 = arith.constant 0 : i32
    %c0_i32_0 = arith.constant 0 : i32
    return %arg0, %c0_i32 : i32, i32
  }
}

</mosaic_0001>

<llo_original>
// kernel: _residual_block_call.1
$region0: #{_residual_block_call.1}
  #allocation0 [shape = 'u32[]', space=smem, size = 0x4, offset = 0x4, fixed_abs, tag = 'smem constant byte address 0x4 - core index']
  #allocation1 [shape = 'u32[72,128]{1,0:T(1,128)}', space=vmem, size = 0x9000, scoped, tag = 'internal scratch']
  %s0 = inlined_call_operand.hbm [shape: f32[8,128], index: 0, kind: input, shape index: {}]
  %s1 = inlined_call_operand.hbm [shape: f32[128,128], index: 1, kind: input, shape index: {}]
  %s2 = inlined_call_operand.vmem [shape: f32[1,128], index: 2, kind: input, shape index: {}]
  %s3 = inlined_call_operand.hbm [shape: f32[128,128], index: 3, kind: input, shape index: {}]
  %s4 = inlined_call_operand.vmem [shape: f32[1,128], index: 4, kind: input, shape index: {}]
  %s5 = inlined_call_operand.hbm [shape: f32[8,128], index: 5, kind: output, shape index: {}]
  %s6 = sld [smem:[#allocation0]]
  $region42: #{_residual_block_call.1} parent=0
    _
  %s8 = ssub.s32 1, %s6
  %s9 = scalar_select 0, %s8, %s6
  $region1: #{_residual_block_call.1} parent=0
    #allocation2 [shape = 'u8[4096]{0}', space=vmem, size = 0x1000, scoped, tag = 'input window, operand 0, single buffered']
    #allocation3 [shape = 's32[1]{0}', space=sflag, size = 0x4, scoped, tag = 'scoped memory for _residual_block_call.1']
    #allocation4 [shape = 's32[1]{0}', space=sflag, size = 0x4, scoped, tag = 'scoped memory for _residual_block_call.1']
    #allocation5 [shape = 'u8[65536]{0}', space=vmem, size = 0x10000, scoped, tag = 'input window, operand 1, single buffered']
    #allocation6 [shape = 's32[1]{0}', space=sflag, size = 0x4, scoped, tag = 'scoped memory for _residual_block_call.1']
    #allocation7 [shape = 'u8[65536]{0}', space=vmem, size = 0x10000, scoped, tag = 'input window, operand 3, single buffered']
    #allocation8 [shape = 'u8[4096]{0}', space=vmem, size = 0x1000, scoped, tag = 'output window, operand 0, single buffered']
    %10 = vsyncpa [#allocation3], 0
    %11 = vsyncpa [#allocation6], 0
    %12 = vsyncpa [#allocation4], 0
    // Predicated region
    $region2: #{_residual_block_call.1} parent=1 // pred_check
      _
    $region3: #{_residual_block_call.1} parent=1 // pred_check_branch
      %14 = sbr.rel (0) target = $region5
    $region4: #{_residual_block_call.1} parent=1 // pred_region
      %16 = vsyncadd [#allocation3], 0
      %s18 = sshll.u32 %s0, 4
      %s19 = int_to_ptr.hbm [resolvable:$true] %s18
      %s20 = sshll.u32 [#allocation2], 4
      %s21 = int_to_ptr.vmem [resolvable:$true] %s20
      %23 = dma.hbm_to_vmem [thread:$0]  %s19, 128, %s21, [#allocation3]
    $region5: #{_residual_block_call.1} parent=1 // pred_fallthru
      _
    // Predicated region
    $region6: #{_residual_block_call.1} parent=1 // pred_check
      _
    $region7: #{_residual_block_call.1} parent=1 // pred_check_branch
      %25 = sbr.rel (0) target = $region9
    $region8: #{_residual_block_call.1} parent=1 // pred_region
      %27 = vsyncadd [#allocation6], 0
      %s28 = sshll.u32 %s1, 4
      %s29 = int_to_ptr.hbm [resolvable:$true] %s28
      %s30 = sshll.u32 [#allocation5], 4
      %s31 = int_to_ptr.vmem [resolvable:$true] %s30
      %36 = dma.hbm_to_vmem [thread:$0]  %s29, 2048, %s31, [#allocation6], 128, 128, 8
    $region9: #{_residual_block_call.1} parent=1 // pred_fallthru
      _
    // Predicated region
    $region10: #{_residual_block_call.1} parent=1 // pred_check
      _
    $region11: #{_residual_block_call.1} parent=1 // pred_check_branch
      %38 = sbr.rel (0) target = $region13
    $region12: #{_residual_block_call.1} parent=1 // pred_region
      _
    $region13: #{_residual_block_call.1} parent=1 // pred_fallthru
      _
    // Predicated region
    $region14: #{_residual_block_call.1} parent=1 // pred_check
      _
    $region15: #{_residual_block_call.1} parent=1 // pred_check_branch
      %40 = sbr.rel (0) target = $region17
    $region16: #{_residual_block_call.1} parent=1 // pred_region
      %42 = vsyncadd [#allocation6], 0
      %s43 = sshll.u32 %s3, 4
      %s44 = int_to_ptr.hbm [resolvable:$true] %s43
      %s45 = sshll.u32 [#allocation7], 4
      %s46 = int_to_ptr.vmem [resolvable:$true] %s45
      %51 = dma.hbm_to_vmem [thread:$0]  %s44, 2048, %s46, [#allocation6], 128, 128, 8
    $region17: #{_residual_block_call.1} parent=1 // pred_fallthru
      _
    // Predicated region
    $region18: #{_residual_block_call.1} parent=1 // pred_check
      _
    $region19: #{_residual_block_call.1} parent=1 // pred_check_branch
      %53 = sbr.rel (0) target = $region21
    $region20: #{_residual_block_call.1} parent=1 // pred_region
      _
    $region21: #{_residual_block_call.1} parent=1 // pred_fallthru
      _
    // Predicated region
    $region22: #{_residual_block_call.1} parent=1 // pred_check
      _
    $region23: #{_residual_block_call.1} parent=1 // pred_check_branch
      %55 = sbr.rel (0) target = $region25
    $region24: #{_residual_block_call.1} parent=1 // pred_region
      %57 = dma.done [#allocation3], 128
    $region25: #{_residual_block_call.1} parent=1 // pred_fallthru
      _
    // Predicated region
    $region26: #{_residual_block_call.1} parent=1 // pred_check
      _
    $region27: #{_residual_block_call.1} parent=1 // pred_check_branch
      %59 = sbr.rel (0) target = $region29
    $region28: #{_residual_block_call.1} parent=1 // pred_region
      %61 = dma.done [#allocation6], 2048
    $region29: #{_residual_block_call.1} parent=1 // pred_fallthru
      _
    // Predicated region
    $region30: #{_residual_block_call.1} parent=1 // pred_check
      _
    $region31: #{_residual_block_call.1} parent=1 // pred_check_branch
      %63 = sbr.rel (0) target = $region33
    $region32: #{_residual_block_call.1} parent=1 // pred_region
      %65 = dma.done [#allocation6], 2048
    $region33: #{_residual_block_call.1} parent=1 // pred_fallthru
      _
    %v66 = vld [vmem:[#allocation2] sm:$0xff]
    %v67 = vld [vmem:[#allocation5] sm:$0xff]
    %v68 = vld [vmem:[#allocation5 + $0x8] sm:$0xff]
    %v69 = vld [vmem:[#allocation5 + $0x10] sm:$0xff]
    %v70 = vld [vmem:[#allocation5 + $0x18] sm:$0xff]
    %v71 = vld [vmem:[#allocation5 + $0x20] sm:$0xff]
    %v72 = vld [vmem:[#allocation5 + $0x28] sm:$0xff]
    %v73 = vld [vmem:[#allocation5 + $0x30] sm:$0xff]
    %v74 = vld [vmem:[#allocation5 + $0x38] sm:$0xff]
    %v75 = vld [vmem:[#allocation5 + $0x40] sm:$0xff]
    %v76 = vld [vmem:[#allocation5 + $0x48] sm:$0xff]
    %v77 = vld [vmem:[#allocation5 + $0x50] sm:$0xff]
    %v78 = vld [vmem:[#allocation5 + $0x58] sm:$0xff]
    %v79 = vld [vmem:[#allocation5 + $0x60] sm:$0xff]
    %v80 = vld [vmem:[#allocation5 + $0x68] sm:$0xff]
    %v81 = vld [vmem:[#allocation5 + $0x70] sm:$0xff]
    %v82 = vld [vmem:[#allocation5 + $0x78] sm:$0xff]
    %v83 = vld [vmem:[#allocation7] sm:$0xff]
    %v84 = vld [vmem:[#allocation7 + $0x8] sm:$0xff]
    %v85 = vld [vmem:[#allocation7 + $0x10] sm:$0xff]
    %v86 = vld [vmem:[#allocation7 + $0x18] sm:$0xff]
    %v87 = vld [vmem:[#allocation7 + $0x20] sm:$0xff]
    %v88 = vld [vmem:[#allocation7 + $0x28] sm:$0xff]
    %v89 = vld [vmem:[#allocation7 + $0x30] sm:$0xff]
    %v90 = vld [vmem:[#allocation7 + $0x38] sm:$0xff]
    %v91 = vld [vmem:[#allocation7 + $0x40] sm:$0xff]
    %v92 = vld [vmem:[#allocation7 + $0x48] sm:$0xff]
    %v93 = vld [vmem:[#allocation7 + $0x50] sm:$0xff]
    %v94 = vld [vmem:[#allocation7 + $0x58] sm:$0xff]
    %v95 = vld [vmem:[#allocation7 + $0x60] sm:$0xff]
    %v96 = vld [vmem:[#allocation7 + $0x68] sm:$0xff]
    %v97 = vld [vmem:[#allocation7 + $0x70] sm:$0xff]
    %v98 = vld [vmem:[#allocation7 + $0x78] sm:$0xff]
    %v99 = vld [vmem:[%s2] sm:$0x1]
    %v101 = vperm.slane %v99, 0
    %103 = vmatpush.msra.mxu0 %v82
    %104 = vmatpush.msra.mxu0 %v81
    %105 = vmatpush.msra.mxu0 %v80
    %106 = vmatpush.msra.mxu0 %v79
    %107 = vmatpush.msra.mxu0 %v78
    %108 = vmatpush.msra.mxu0 %v77
    %109 = vmatpush.msra.mxu0 %v76
    %110 = vmatpush.msra.mxu0 %v75
    %111 = vmatpush.msra.mxu0 %v74
    %112 = vmatpush.msra.mxu0 %v73
    %113 = vmatpush.msra.mxu0 %v72
    %114 = vmatpush.msra.mxu0 %v71
    %115 = vmatpush.msra.mxu0 %v70
    %116 = vmatpush.msra.mxu0 %v69
    %117 = vmatpush.msra.mxu0 %v68
    %118 = vmatpush.msra.mxu0 %v67
    %119 = vmatmul.f32.gmra.mxu0 %v66
    %v120 = vpop.f32.mrf.mxu0
    %v121 = vadd.f32 %v101, %v120
    %122 = vdwg.mxu0
    %v123 = vxor.u32 %v121, 2147483648
    %v124 = vmul.f32 %v123, 1.442695
    %v125 = vpow.pop %v124
    %v126 = vadd.f32 %v125, 1.0
    %v127 = vrcp.pop %v126
    %v128 = vmul.f32 %v126, %v127
    %v129 = vsub.f32 1.0, %v128
    %v130 = vmul.f32 %v127, %v129
    %v131 = vadd.f32 %v127, %v130
    %vm132 = vweird.f32 %v126
    %vm133 = vweird.f32 %v127
    %vm134 = vmor %vm132, %vm133
    %v135 = vsel %vm134, %v127, %v131
    %v136 = vand.u32 2147483647, %v126
    %vm137 = vcmp.eq.f32.partialorder %v136, 8.507059e+37
    %v138 = vand.u32 %v126, 2147483648
    %v139 = vor.u32 1.1754944e-38, %v138
    %v140 = vsel %vm137, %v139, %v135
    %v141 = vmul.f32 1.0, %v140
    %v142 = vmul.f32 %v121, %v141
    %v143 = vld [vmem:[%s4] sm:$0x1]
    %v145 = vperm.slane %v143, 0
    %147 = vmatpush.msra.mxu0 %v98
    %148 = vmatpush.msra.mxu0 %v97
    %149 = vmatpush.msra.mxu0 %v96
    %150 = vmatpush.msra.mxu0 %v95
    %151 = vmatpush.msra.mxu0 %v94
    %152 = vmatpush.msra.mxu0 %v93
    %153 = vmatpush.msra.mxu0 %v92
    %154 = vmatpush.msra.mxu0 %v91
    %155 = vmatpush.msra.mxu0 %v90
    %156 = vmatpush.msra.mxu0 %v89
    %157 = vmatpush.msra.mxu0 %v88
    %158 = vmatpush.msra.mxu0 %v87
    %159 = vmatpush.msra.mxu0 %v86
    %160 = vmatpush.msra.mxu0 %v85
    %161 = vmatpush.msra.mxu0 %v84
    %162 = vmatpush.msra.mxu0 %v83
    %163 = vmatmul.f32.gmra.mxu0 %v142
    %v164 = vpop.f32.mrf.mxu0
    %v165 = vadd.f32 %v145, %v164
    %166 = vdwg.mxu0
    %v167 = vadd.f32 %v66, %v165
    %v168 = vxor.u32 %v167, 2147483648
    %v169 = vmul.f32 %v168, 1.442695
    %v170 = vpow.pop %v169
    %v171 = vadd.f32 %v170, 1.0
    %v172 = vrcp.pop %v171
    %v173 = vmul.f32 %v171, %v172
    %v174 = vsub.f32 1.0, %v173
    %v175 = vmul.f32 %v172, %v174
    %v176 = vadd.f32 %v172, %v175
    %vm177 = vweird.f32 %v171
    %vm178 = vweird.f32 %v172
    %vm179 = vmor %vm177, %vm178
    %v180 = vsel %vm179, %v172, %v176
    %v181 = vand.u32 2147483647, %v171
    %vm182 = vcmp.eq.f32.partialorder %v181, 8.507059e+37
    %v183 = vand.u32 %v171, 2147483648
    %v184 = vor.u32 1.1754944e-38, %v183
    %v185 = vsel %vm182, %v184, %v180
    %v186 = vmul.f32 1.0, %v185
    %v187 = vmul.f32 %v167, %v186
    %188 = vst [vmem:[#allocation8] sm:$0xff] %v187
    // Predicated region
    $region34: #{_residual_block_call.1} parent=1 // pred_check
      _
    $region35: #{_residual_block_call.1} parent=1 // pred_check_branch
      %190 = sbr.rel (0) target = $region37
    $region36: #{_residual_block_call.1} parent=1 // pred_region
      %192 = vsyncadd [#allocation4], 0
      %s194 = sshll.u32 [#allocation8], 4
      %s195 = int_to_ptr.vmem [resolvable:$true] %s194
      %s196 = sshll.u32 %s5, 4
      %s197 = int_to_ptr.hbm [resolvable:$true] %s196
      %199 = dma.vmem_to_hbm [thread:$0]  %s195, 128, %s197, [#allocation4]
    $region37: #{_residual_block_call.1} parent=1 // pred_fallthru
      _
    // Predicated region
    $region38: #{_residual_block_call.1} parent=1 // pred_check
      _
    $region39: #{_residual_block_call.1} parent=1 // pred_check_branch
      %201 = sbr.rel (0) target = $region41
    $region40: #{_residual_block_call.1} parent=1 // pred_region
      %203 = dma.done [#allocation4], 128
    $region41: #{_residual_block_call.1} parent=1 // pred_fallthru
      _
    %204 = vsyncpa [#allocation3], 1
    %205 = vsyncpa [#allocation6], 1
    %206 = vsyncpa [#allocation4], 1

// kernel: _residual_block_call.1
$region0: #{_residual_block_call.1}
  #allocation0 [shape = 'u32[]', space=smem, size = 0x4, offset = 0x4, fixed_abs, tag = 'smem constant byte address 0x4 - core index']
  #allocation1 [shape = 'u32[72,128]{1,0:T(1,128)}', space=vmem, size = 0x9000, scoped, tag = 'internal scratch']
  %s0 = inlined_call_operand.hbm [shape: f32[8,128], index: 0, kind: input, shape index: {}]
  %s1 = inlined_call_operand.hbm [shape: f32[128,128], index: 1, kind: input, shape index: {}]
  %s2 = inlined_call_operand.vmem [shape: f32[1,128], index: 2, kind: input, shape index: {}]
  %s3 = inlined_call_operand.hbm [shape: f32[128,128], index: 3, kind: input, shape index: {}]
  %s4 = inlined_call_operand.vmem [shape: f32[1,128], index: 4, kind: input, shape index: {}]
  %s5 = inlined_call_operand.hbm [shape: f32[8,128], index: 5, kind: output, shape index: {}]
  %s6 = sld [smem:[#allocation0]]
  $region42: #{_residual_block_call.1} parent=0
    _
  %s8 = ssub.s32 1, %s6
  %s9 = scalar_select 0, %s8, %s6
  $region1: #{_residual_block_call.1} parent=0
    #allocation2 [shape = 'u8[4096]{0}', space=vmem, size = 0x1000, scoped, tag = 'input window, operand 0, single buffered']
    #allocation3 [shape = 's32[1]{0}', space=sflag, size = 0x4, scoped, tag = 'scoped memory for _residual_block_call.1']
    #allocation4 [shape = 's32[1]{0}', space=sflag, size = 0x4, scoped, tag = 'scoped memory for _residual_block_call.1']
    #allocation5 [shape = 'u8[65536]{0}', space=vmem, size = 0x10000, scoped, tag = 'input window, operand 1, single buffered']
    #allocation6 [shape = 's32[1]{0}', space=sflag, size = 0x4, scoped, tag = 'scoped memory for _residual_block_call.1']
    #allocation7 [shape = 'u8[65536]{0}', space=vmem, size = 0x10000, scoped, tag = 'input window, operand 3, single buffered']
    #allocation8 [shape = 'u8[4096]{0}', space=vmem, size = 0x1000, scoped, tag = 'output window, operand 0, single buffered']
    %10 = vsyncpa [#allocation3], 0
    %11 = vsyncpa [#allocation6], 0
    %12 = vsyncpa [#allocation4], 0
    // Predicated region
    $region2: #{_residual_block_call.1} parent=1 // pred_check
      _
    $region3: #{_residual_block_call.1} parent=1 // pred_check_branch
      %14 = sbr.rel (0) target = $region5
    $region4: #{_residual_block_call.1} parent=1 // pred_region
      %16 = vsyncadd [#allocation3], 0
      %s18 = sshll.u32 %s0, 4
      %s19 = int_to_ptr.hbm [resolvable:$true] %s18
      %s20 = sshll.u32 [#allocation2], 4
      %s21 = int_to_ptr.vmem [resolvable:$true] %s20
      %23 = dma.hbm_to_vmem [thread:$0]  %s19, 128, %s21, [#allocation3]
    $region5: #{_residual_block_call.1} parent=1 // pred_fallthru
      _
    // Predicated region
    $region6: #{_residual_block_call.1} parent=1 // pred_check
      _
    $region7: #{_residual_block_call.1} parent=1 // pred_check_branch
      %25 = sbr.rel (0) target = $region9
    $region8: #{_residual_block_call.1} parent=1 // pred_region
      %27 = vsyncadd [#allocation6], 0
      %s28 = sshll.u32 %s1, 4
      %s29 = int_to_ptr.hbm [resolvable:$true] %s28
      %s30 = sshll.u32 [#allocation5], 4
      %s31 = int_to_ptr.vmem [resolvable:$true] %s30
      %36 = dma.hbm_to_vmem [thread:$0]  %s29, 2048, %s31, [#allocation6], 128, 128, 8
    $region9: #{_residual_block_call.1} parent=1 // pred_fallthru
      _
    // Predicated region
    $region10: #{_residual_block_call.1} parent=1 // pred_check
      _
    $region11: #{_residual_block_call.1} parent=1 // pred_check_branch
      %38 = sbr.rel (0) target = $region13
    $region12: #{_residual_block_call.1} parent=1 // pred_region
      _
    $region13: #{_residual_block_call.1} parent=1 // pred_fallthru
      _
    // Predicated region
    $region14: #{_residual_block_call.1} parent=1 // pred_check
      _
    $region15: #{_residual_block_call.1} parent=1 // pred_check_branch
      %40 = sbr.rel (0) target = $region17
    $region16: #{_residual_block_call.1} parent=1 // pred_region
      %42 = vsyncadd [#allocation6], 0
      %s43 = sshll.u32 %s3, 4
      %s44 = int_to_ptr.hbm [resolvable:$true] %s43
      %s45 = sshll.u32 [#allocation7], 4
      %s46 = int_to_ptr.vmem [resolvable:$true] %s45
      %51 = dma.hbm_to_vmem [thread:$0]  %s44, 2048, %s46, [#allocation6], 128, 128, 8
    $region17: #{_residual_block_call.1} parent=1 // pred_fallthru
      _
    // Predicated region
    $region18: #{_residual_block_call.1} parent=1 // pred_check
      _
    $region19: #{_residual_block_call.1} parent=1 // pred_check_branch
      %53 = sbr.rel (0) target = $region21
    $region20: #{_residual_block_call.1} parent=1 // pred_region
      _
    $region21: #{_residual_block_call.1} parent=1 // pred_fallthru
      _
    // Predicated region
    $region22: #{_residual_block_call.1} parent=1 // pred_check
      _
    $region23: #{_residual_block_call.1} parent=1 // pred_check_branch
      %55 = sbr.rel (0) target = $region25
    $region24: #{_residual_block_call.1} parent=1 // pred_region
      %57 = dma.done [#allocation3], 128
    $region25: #{_residual_block_call.1} parent=1 // pred_fallthru
      _
    // Predicated region
    $region26: #{_residual_block_call.1} parent=1 // pred_check
      _
    $region27: #{_residual_block_call.1} parent=1 // pred_check_branch
      %59 = sbr.rel (0) target = $region29
    $region28: #{_residual_block_call.1} parent=1 // pred_region
      %61 = dma.done [#allocation6], 2048
    $region29: #{_residual_block_call.1} parent=1 // pred_fallthru
      _
    // Predicated region
    $region30: #{_residual_block_call.1} parent=1 // pred_check
      _
    $region31: #{_residual_block_call.1} parent=1 // pred_check_branch
      %63 = sbr.rel (0) target = $region33
    $region32: #{_residual_block_call.1} parent=1 // pred_region
      %65 = dma.done [#allocation6], 2048
    $region33: #{_residual_block_call.1} parent=1 // pred_fallthru
      _
    %v66 = vld [vmem:[#allocation2] sm:$0xff]
    %v67 = vld [vmem:[#allocation5] sm:$0xff]
    %v68 = vld [vmem:[#allocation5 + $0x8] sm:$0xff]
    %v69 = vld [vmem:[#allocation5 + $0x10] sm:$0xff]
    %v70 = vld [vmem:[#allocation5 + $0x18] sm:$0xff]
    %v71 = vld [vmem:[#allocation5 + $0x20] sm:$0xff]
    %v72 = vld [vmem:[#allocation5 + $0x28] sm:$0xff]
    %v73 = vld [vmem:[#allocation5 + $0x30] sm:$0xff]
    %v74 = vld [vmem:[#allocation5 + $0x38] sm:$0xff]
    %v75 = vld [vmem:[#allocation5 + $0x40] sm:$0xff]
    %v76 = vld [vmem:[#allocation5 + $0x48] sm:$0xff]
    %v77 = vld [vmem:[#allocation5 + $0x50] sm:$0xff]
    %v78 = vld [vmem:[#allocation5 + $0x58] sm:$0xff]
    %v79 = vld [vmem:[#allocation5 + $0x60] sm:$0xff]
    %v80 = vld [vmem:[#allocation5 + $0x68] sm:$0xff]
    %v81 = vld [vmem:[#allocation5 + $0x70] sm:$0xff]
    %v82 = vld [vmem:[#allocation5 + $0x78] sm:$0xff]
    %v83 = vld [vmem:[#allocation7] sm:$0xff]
    %v84 = vld [vmem:[#allocation7 + $0x8] sm:$0xff]
    %v85 = vld [vmem:[#allocation7 + $0x10] sm:$0xff]
    %v86 = vld [vmem:[#allocation7 + $0x18] sm:$0xff]
    %v87 = vld [vmem:[#allocation7 + $0x20] sm:$0xff]
    %v88 = vld [vmem:[#allocation7 + $0x28] sm:$0xff]
    %v89 = vld [vmem:[#allocation7 + $0x30] sm:$0xff]
    %v90 = vld [vmem:[#allocation7 + $0x38] sm:$0xff]
    %v91 = vld [vmem:[#allocation7 + $0x40] sm:$0xff]
    %v92 = vld [vmem:[#allocation7 + $0x48] sm:$0xff]
    %v93 = vld [vmem:[#allocation7 + $0x50] sm:$0xff]
    %v94 = vld [vmem:[#allocation7 + $0x58] sm:$0xff]
    %v95 = vld [vmem:[#allocation7 + $0x60] sm:$0xff]
    %v96 = vld [vmem:[#allocation7 + $0x68] sm:$0xff]
    %v97 = vld [vmem:[#allocation7 + $0x70] sm:$0xff]
    %v98 = vld [vmem:[#allocation7 + $0x78] sm:$0xff]
    %v99 = vld [vmem:[%s2] sm:$0x1]
    %v101 = vperm.slane %v99, 0
    %103 = vmatpush.msra.mxu0 %v82
    %104 = vmatpush.msra.mxu0 %v81
    %105 = vmatpush.msra.mxu0 %v80
    %106 = vmatpush.msra.mxu0 %v79
    %107 = vmatpush.msra.mxu0 %v78
    %108 = vmatpush.msra.mxu0 %v77
    %109 = vmatpush.msra.mxu0 %v76
    %110 = vmatpush.msra.mxu0 %v75
    %111 = vmatpush.msra.mxu0 %v74
    %112 = vmatpush.msra.mxu0 %v73
    %113 = vmatpush.msra.mxu0 %v72
    %114 = vmatpush.msra.mxu0 %v71
    %115 = vmatpush.msra.mxu0 %v70
    %116 = vmatpush.msra.mxu0 %v69
    %117 = vmatpush.msra.mxu0 %v68
    %118 = vmatpush.msra.mxu0 %v67
    %119 = vmatmul.f32.gmra.mxu0 %v66
    %v120 = vpop.f32.mrf.mxu0
    %v121 = vadd.f32 %v101, %v120
    %122 = vdwg.mxu0
    %v123 = vxor.u32 %v121, 2147483648
    %v124 = vmul.f32 %v123, 1.442695
    %v125 = vpow.pop %v124
    %v126 = vadd.f32 %v125, 1.0
    %v127 = vrcp.pop %v126
    %v128 = vmul.f32 %v126, %v127
    %v129 = vsub.f32 1.0, %v128
    %v130 = vmul.f32 %v127, %v129
    %v131 = vadd.f32 %v127, %v130
    %vm132 = vweird.f32 %v126
    %vm133 = vweird.f32 %v127
    %vm134 = vmor %vm132, %vm133
    %v135 = vsel %vm134, %v127, %v131
    %v136 = vand.u32 2147483647, %v126
    %vm137 = vcmp.eq.f32.partialorder %v136, 8.507059e+37
    %v138 = vand.u32 %v126, 2147483648
    %v139 = vor.u32 1.1754944e-38, %v138
    %v140 = vsel %vm137, %v139, %v135
    %v141 = vmul.f32 1.0, %v140
    %v142 = vmul.f32 %v121, %v141
    %v143 = vld [vmem:[%s4] sm:$0x1]
    %v145 = vperm.slane %v143, 0
    %147 = vmatpush.msra.mxu0 %v98
    %148 = vmatpush.msra.mxu0 %v97
    %149 = vmatpush.msra.mxu0 %v96
    %150 = vmatpush.msra.mxu0 %v95
    %151 = vmatpush.msra.mxu0 %v94
    %152 = vmatpush.msra.mxu0 %v93
    %153 = vmatpush.msra.mxu0 %v92
    %154 = vmatpush.msra.mxu0 %v91
    %155 = vmatpush.msra.mxu0 %v90
    %156 = vmatpush.msra.mxu0 %v89
    %157 = vmatpush.msra.mxu0 %v88
    %158 = vmatpush.msra.mxu0 %v87
    %159 = vmatpush.msra.mxu0 %v86
    %160 = vmatpush.msra.mxu0 %v85
    %161 = vmatpush.msra.mxu0 %v84
    %162 = vmatpush.msra.mxu0 %v83
    %163 = vmatmul.f32.gmra.mxu0 %v142
    %v164 = vpop.f32.mrf.mxu0
    %v165 = vadd.f32 %v145, %v164
    %166 = vdwg.mxu0
    %v167 = vadd.f32 %v66, %v165
    %v168 = vxor.u32 %v167, 2147483648
    %v169 = vmul.f32 %v168, 1.442695
    %v170 = vpow.pop %v169
    %v171 = vadd.f32 %v170, 1.0
    %v172 = vrcp.pop %v171
    %v173 = vmul.f32 %v171, %v172
    %v174 = vsub.f32 1.0, %v173
    %v175 = vmul.f32 %v172, %v174
    %v176 = vadd.f32 %v172, %v175
    %vm177 = vweird.f32 %v171
    %vm178 = vweird.f32 %v172
    %vm179 = vmor %vm177, %vm178
    %v180 = vsel %vm179, %v172, %v176
    %v181 = vand.u32 2147483647, %v171
    %vm182 = vcmp.eq.f32.partialorder %v181, 8.507059e+37
    %v183 = vand.u32 %v171, 2147483648
    %v184 = vor.u32 1.1754944e-38, %v183
    %v185 = vsel %vm182, %v184, %v180
    %v186 = vmul.f32 1.0, %v185
    %v187 = vmul.f32 %v167, %v186
    %188 = vst [vmem:[#allocation8] sm:$0xff] %v187
    // Predicated region
    $region34: #{_residual_block_call.1} parent=1 // pred_check
      _
    $region35: #{_residual_block_call.1} parent=1 // pred_check_branch
      %190 = sbr.rel (0) target = $region37
    $region36: #{_residual_block_call.1} parent=1 // pred_region
      %192 = vsyncadd [#allocation4], 0
      %s194 = sshll.u32 [#allocation8], 4
      %s195 = int_to_ptr.vmem [resolvable:$true] %s194
      %s196 = sshll.u32 %s5, 4
      %s197 = int_to_ptr.hbm [resolvable:$true] %s196
      %199 = dma.vmem_to_hbm [thread:$0]  %s195, 128, %s197, [#allocation4]
    $region37: #{_residual_block_call.1} parent=1 // pred_fallthru
      _
    // Predicated region
    $region38: #{_residual_block_call.1} parent=1 // pred_check
      _
    $region39: #{_residual_block_call.1} parent=1 // pred_check_branch
      %201 = sbr.rel (0) target = $region41
    $region40: #{_residual_block_call.1} parent=1 // pred_region
      %203 = dma.done [#allocation4], 128
    $region41: #{_residual_block_call.1} parent=1 // pred_fallthru
      _
    %204 = vsyncpa [#allocation3], 1
    %205 = vsyncpa [#allocation6], 1
    %206 = vsyncpa [#allocation4], 1

</llo_original>
